<compile_context>
chip_gen: v7x
topology: tpu7x:2x2x1
jax: 0.10.0
libtpu: 0.0.40
codegen_flags: <defaults>
</compile_context>

<pallas_src>
import functools

import jax
import jax.numpy as jnp
from jax import lax
from jax.experimental import pallas as pl
from jax.experimental.pallas import tpu as pltpu

LANES = 128
SUBLANES = 8
MIN_TILE = SUBLANES * LANES       # alignment of the flat kernel region (1024)
ROW_BLOCK = 4096                  # rows per grid step (2 MiB f32 per input)
CHUNK_ROWS = 64                   # inner sub-tile rows (8 vregs f32)
VMEM_LIMIT_BYTES = 32 * 1024 * 1024

ALPHA = 0.8
GAMMA = 2
# (smooth=1 is unused in the reference forward)


def _num_tensorcores():
    """2-way grid split only on chips with two TensorCores per device."""
    try:
        kind = jax.devices()[0].device_kind.lower()
    except Exception:  # pragma: no cover - defensive
        return 1
    single = ("v5e", "v5 lite", "v5lite", "lite", "v6e", "v6 lite", "v2", "v3")
    if any(tag in kind for tag in single):
        return 1
    dual = ("v4", "v5p", "v5", "v7", "7x")
    if any(tag in kind for tag in dual):
        return 2
    return 1


def _pick_unroll(n_chunks):
    if n_chunks <= 8:
        return max(n_chunks, 1)
    for u in (8, 4, 2):
        if n_chunks % u == 0:
            return u
    return 1


def _focal_bce_kernel(x_ref, t_ref, out_ref, *, block_rows, chunk_rows,
                      steps_per_core, total_blocks, valid_rows,
                      has_tail, has_dup):
    c = pl.program_id(0)                 # core split (parallel)
    s = pl.program_id(1)                 # reduction step within the split
    blk = c * steps_per_core + s         # unclamped logical block index

    @pl.when(s == 0)
    def _():
        out_ref[...] = jnp.zeros_like(out_ref)

    n_chunks = block_rows // chunk_rows
    unroll = _pick_unroll(n_chunks)

    def accumulate(masked):
        # Hoisted, step-invariant pieces of the (optional) tail mask.
        if masked:
            row_iota = lax.broadcasted_iota(jnp.int32, (chunk_rows, LANES), 0)
            base_row = blk * block_rows          # global row of this block

        def body(i, acc):
            start = pl.multiple_of(i * chunk_rows, chunk_rows)
            x = x_ref[pl.ds(start, chunk_rows), :].astype(jnp.float32)
            t = t_ref[pl.ds(start, chunk_rows), :].astype(jnp.float32)
            # Numerically stable BCE(sigmoid(x), t):
            #   max(x, 0) - x*t + log1p(exp(-|x|))
            bce = (jnp.maximum(x, 0.0) - x * t
                   + jnp.log1p(jnp.exp(-jnp.abs(x))))
            if masked:
                # Row-level mask (int32-safe) for the Pallas partial last
                # block: garbage rows past `valid_rows` contribute 0.
                grow = base_row + start + row_iota
                bce = jnp.where(grow < valid_rows, bce, 0.0)
            return acc + bce

        acc = lax.fori_loop(0, n_chunks, body,
                            jnp.zeros((chunk_rows, LANES), jnp.float32),
                            unroll=unroll)
        # Fold the chunk accumulator to (8,128) with pure VALU adds; the
        # single cross-lane reduce + focal formula live in the wrapper.
        partial = acc.reshape(chunk_rows // SUBLANES, SUBLANES, LANES).sum(0)
        out_ref[...] += partial.reshape(1, SUBLANES, LANES)

    last_blk = total_blocks - 1
    if has_tail:
        valid = blk < total_blocks          # False only on clamped dup steps

        @pl.when(jnp.logical_and(valid, blk != last_blk))
        def _():
            accumulate(False)               # full blocks: zero mask work

        @pl.when(blk == last_blk)
        def _():
            accumulate(True)                # tail block only: masked
    elif has_dup:
        @pl.when(blk < total_blocks)
        def _():
            accumulate(False)               # skip clamped duplicate blocks
    else:
        accumulate(False)


def focal_loss(inputs, targets, alpha=ALPHA, gamma=GAMMA,
               row_block=ROW_BLOCK):
    """Pallas implementation of FocalLoss.forward (returns a scalar)."""
    x = jnp.ravel(inputs)                  # native dtype; upcast in-kernel
    t = jnp.ravel(targets)
    n = x.shape[0]

    n_main = (n // MIN_TILE) * MIN_TILE    # 1024-aligned prefix for the kernel
    rem = n - n_main

    bce_sum = jnp.float32(0.0)

    if n_main > 0:
        if rem:
            # Non-1024-multiple sizes: unavoidable one-time prefix slice here;
            # callers should prefer 1024-multiple element counts (zero copy).
            x_main = x[:n_main]
            t_main = t[:n_main]
        else:
            x_main, t_main = x, t

        rows = n_main // LANES             # multiple of 8 by construction
        x2 = x_main.reshape(rows, LANES)
        t2 = t_main.reshape(rows, LANES)

        block_rows = min(rows, row_block)  # multiple of 8, or the full dim
        total_blocks = pl.cdiv(rows, block_rows)
        num_cores = min(_num_tensorcores(), total_blocks)
        steps_per_core = pl.cdiv(total_blocks, num_cores)
        last_block = total_blocks - 1
        has_tail = (rows % block_rows) != 0
        has_dup = (num_cores > 1) and (total_blocks % num_cores != 0)
        chunk_rows = CHUNK_ROWS if block_rows % CHUNK_ROWS == 0 else SUBLANES

        def in_index(c, s):
            # Clamp past-the-end steps to the last block; their compute is
            # skipped in-kernel (blk >= total_blocks).
            return (jnp.minimum(c * steps_per_core + s, last_block), 0)

        tile_spec = pl.BlockSpec((block_rows, LANES), in_index)

        kernel = functools.partial(
            _focal_bce_kernel,
            block_rows=block_rows,
            chunk_rows=chunk_rows,
            steps_per_core=steps_per_core,
            total_blocks=total_blocks,
            valid_rows=rows,
            has_tail=has_tail,
            has_dup=has_dup,
        )

        partials = pl.pallas_call(
            kernel,
            out_shape=jax.ShapeDtypeStruct((num_cores, SUBLANES, LANES),
                                           jnp.float32),
            grid_spec=pltpu.PrefetchScalarGridSpec(
                num_scalar_prefetch=0,
                grid=(num_cores, steps_per_core),
                in_specs=[tile_spec, tile_spec],
                out_specs=pl.BlockSpec((1, SUBLANES, LANES),
                                       lambda c, s: (c, 0, 0)),
            ),
            compiler_params=pltpu.CompilerParams(
                dimension_semantics=("parallel", "arbitrary"),
                vmem_limit_bytes=VMEM_LIMIT_BYTES),
        )(x2, t2)

        # Note: plain f32 accumulation; for n >> 1e9 elements consider a
        # compensated add if sub-1e-5 agreement with the f32 mean matters.
        bce_sum = bce_sum + jnp.sum(partials)

    if rem:
        # <1024-element remainder folded into the scalar finalize (no pad,
        # no full-array copy just for alignment).
        x_r = x[n_main:].astype(jnp.float32)
        t_r = t[n_main:].astype(jnp.float32)
        bce_r = (jnp.maximum(x_r, 0.0) - x_r * t_r
                 + jnp.log1p(jnp.exp(-jnp.abs(x_r))))
        bce_sum = bce_sum + jnp.sum(bce_r)

    bce_mean = bce_sum / jnp.float32(n)
    return alpha * (1.0 - jnp.exp(-bce_mean)) ** gamma * bce_mean


def _reference(inputs, targets, alpha=ALPHA, gamma=GAMMA):
    p = jax.nn.sigmoid(inputs.astype(jnp.float32)).ravel()
    t = targets.astype(jnp.float32).ravel()
    eps = 1e-12
    bce = -(t * jnp.log(jnp.maximum(p, eps))
            + (1.0 - t) * jnp.log(jnp.maximum(1.0 - p, eps)))
    bce = jnp.mean(bce)
    return alpha * (1.0 - jnp.exp(-bce)) ** gamma * bce


if __name__ == "__main__":
    key = jax.random.PRNGKey(0)
    k1, k2 = jax.random.split(key)

    # Primary case: logits (N, C, H, W), binary targets in {0, 1}.
    x = jax.random.normal(k1, (2, 4, 16, 16), dtype=jnp.float32)
    tgt = (jax.random.uniform(k2, (2, 4, 16, 16)) > 0.5).astype(jnp.float32)
    loss = focal_loss(x, tgt)
    jax.block_until_ready(loss)
    ref = _reference(x, tgt)
    assert jnp.allclose(loss, ref, atol=1e-5, rtol=1e-5), (loss, ref)

    # Coverage: partial tail block (+ duplicate-block skip on dual-TC chips).
    k3, k4 = jax.random.split(k1)
    x2 = jax.random.normal(k3, (5, 4, 16, 16), dtype=jnp.float32)
    t2 = (jax.random.uniform(k4, (5, 4, 16, 16)) > 0.5).astype(jnp.float32)
    loss2 = focal_loss(x2, t2, row_block=16)
    jax.block_until_ready(loss2)
    ref2 = _reference(x2, t2)
    assert jnp.allclose(loss2, ref2, atol=1e-5, rtol=1e-5), (loss2, ref2)

    # Coverage: element count not a multiple of 1024 (wrapper remainder path).
    k5, k6 = jax.random.split(k2)
    x3 = jax.random.normal(k5, (2, 3, 17, 19), dtype=jnp.float32)
    t3 = (jax.random.uniform(k6, (2, 3, 17, 19)) > 0.5).astype(jnp.float32)
    loss3 = focal_loss(x3, t3)
    jax.block_until_ready(loss3)
    ref3 = _reference(x3, t3)
    assert jnp.allclose(loss3, ref3, atol=1e-5, rtol=1e-5), (loss3, ref3)

    print("KERNEL_OK")
</pallas_src>

<mosaic_0001>
module attributes {stable_mosaic.version = 11 : i64} {
  func.func @_focal_bce_kernel(%arg0: i32, %arg1: i32, %arg2: memref<16x128xf32, #tpu.memory_space<vmem>>, %arg3: memref<16x128xf32, #tpu.memory_space<vmem>>, %arg4: memref<1x8x128xf32, #tpu.memory_space<vmem>>) attributes {dimension_semantics = [#tpu.dimension_semantics<parallel>, #tpu.dimension_semantics<arbitrary>], iteration_bounds = array<i64: 1, 1>, scalar_prefetch = 0 : i64, scratch_operands = 0 : i64, tpu.core_type = #tpu.core_type<tc>, window_params = [{transform_indices = @transform_0, window_bounds = array<i64: 16, 128>}, {transform_indices = @transform_1, window_bounds = array<i64: 16, 128>}, {transform_indices = @transform_2, window_bounds = array<i64: 1, 8, 128>}]} {
    %c0_i32 = arith.constant 0 : i32
    %0 = arith.cmpi eq, %arg1, %c0_i32 : i32
    %1 = arith.extui %0 : i1 to i32
    %c0_i32_0 = arith.constant 0 : i32
    %2 = arith.cmpi ne, %1, %c0_i32_0 : i32
    scf.if %2 {
      %cst_17 = arith.constant 0.000000e+00 : f32
      %44 = vector.broadcast %cst_17 : f32 to vector<1x8x128xf32>
      %c0_18 = arith.constant 0 : index
      %c0_19 = arith.constant 0 : index
      %c0_20 = arith.constant 0 : index
      %45 = vector.load %arg4[%c0_18, %c0_19, %c0_20] : memref<1x8x128xf32, #tpu.memory_space<vmem>>, vector<1x8x128xf32>
      tpu.vector_store %arg4[%c0_18, %c0_19, %c0_20], %44 {strides = array<i32>} : memref<1x8x128xf32, #tpu.memory_space<vmem>>, vector<1x8x128xf32>,
    } else {
    }
    %cst = arith.constant 0.000000e+00 : f32
    %3 = vector.broadcast %cst : f32 to vector<8x128xf32>
    %c0_i32_1 = arith.constant 0 : i32
    %c8_i32 = arith.constant 8 : i32
    %4 = arith.muli %c0_i32_1, %c8_i32 : i32
    %5 = tpu.assume_multiple %4, 8 : i32
    %6 = arith.index_cast %5 : i32 to index
    %c0 = arith.constant 0 : index
    %7 = vector.load %arg2[%6, %c0] : memref<16x128xf32, #tpu.memory_space<vmem>>, vector<8x128xf32>
    %8 = arith.index_cast %5 : i32 to index
    %c0_2 = arith.constant 0 : index
    %9 = vector.load %arg3[%8, %c0_2] : memref<16x128xf32, #tpu.memory_space<vmem>>, vector<8x128xf32>
    %cst_3 = arith.constant 0.000000e+00 : f32
    %10 = vector.broadcast %cst_3 : f32 to vector<8x128xf32>
    %11 = arith.maximumf %7, %10 : vector<8x128xf32>
    %12 = arith.mulf %7, %9 : vector<8x128xf32>
    %13 = arith.subf %11, %12 : vector<8x128xf32>
    %14 = math.absf %7 : vector<8x128xf32>
    %cst_4 = arith.constant 0.000000e+00 : f32
    %15 = vector.broadcast %cst_4 : f32 to vector<8x128xf32>
    %16 = arith.subf %15, %14 : vector<8x128xf32>
    %17 = math.exp %16 : vector<8x128xf32>
    %18 = math.log1p %17 : vector<8x128xf32>
    %19 = arith.addf %13, %18 : vector<8x128xf32>
    %20 = arith.addf %3, %19 : vector<8x128xf32>
    %c1_i32 = arith.constant 1 : i32
    %c8_i32_5 = arith.constant 8 : i32
    %21 = arith.muli %c1_i32, %c8_i32_5 : i32
    %22 = tpu.assume_multiple %21, 8 : i32
    %23 = arith.index_cast %22 : i32 to index
    %c0_6 = arith.constant 0 : index
    %24 = vector.load %arg2[%23, %c0_6] : memref<16x128xf32, #tpu.memory_space<vmem>>, vector<8x128xf32>
    %25 = arith.index_cast %22 : i32 to index
    %c0_7 = arith.constant 0 : index
    %26 = vector.load %arg3[%25, %c0_7] : memref<16x128xf32, #tpu.memory_space<vmem>>, vector<8x128xf32>
    %cst_8 = arith.constant 0.000000e+00 : f32
    %27 = vector.broadcast %cst_8 : f32 to vector<8x128xf32>
    %28 = arith.maximumf %24, %27 : vector<8x128xf32>
    %29 = arith.mulf %24, %26 : vector<8x128xf32>
    %30 = arith.subf %28, %29 : vector<8x128xf32>
    %31 = math.absf %24 : vector<8x128xf32>
    %cst_9 = arith.constant 0.000000e+00 : f32
    %32 = vector.broadcast %cst_9 : f32 to vector<8x128xf32>
    %33 = arith.subf %32, %31 : vector<8x128xf32>
    %34 = math.exp %33 : vector<8x128xf32>
    %35 = math.log1p %34 : vector<8x128xf32>
    %36 = arith.addf %30, %35 : vector<8x128xf32>
    %37 = arith.addf %20, %36 : vector<8x128xf32>
    %c2_i32 = arith.constant 2 : i32
    %38 = vector.shape_cast %37 : vector<8x128xf32> to vector<1x8x128xf32>
    %cst_10 = arith.constant dense<0.000000e+00> : vector<8x128xf32>
    %39 = vector.multi_reduction <add>, %38, %cst_10 [0] : vector<1x8x128xf32> to vector<8x128xf32>
    %c0_11 = arith.constant 0 : index
    %c0_12 = arith.constant 0 : index
    %c0_13 = arith.constant 0 : index
    %40 = vector.load %arg4[%c0_11, %c0_12, %c0_13] : memref<1x8x128xf32, #tpu.memory_space<vmem>>, vector<1x8x128xf32>
    %41 = vector.shape_cast %39 : vector<8x128xf32> to vector<1x8x128xf32>
    %42 = arith.addf %40, %41 : vector<1x8x128xf32>
    %c0_14 = arith.constant 0 : index
    %c0_15 = arith.constant 0 : index
    %c0_16 = arith.constant 0 : index
    %43 = vector.load %arg4[%c0_14, %c0_15, %c0_16] : memref<1x8x128xf32, #tpu.memory_space<vmem>>, vector<1x8x128xf32>
    tpu.vector_store %arg4[%c0_14, %c0_15, %c0_16], %42 {strides = array<i32>} : memref<1x8x128xf32, #tpu.memory_space<vmem>>, vector<1x8x128xf32>,
    return
  }
  func.func @transform_0(%arg0: i32, %arg1: i32) -> (i32, i32) {
    %c1_i32 = arith.constant 1 : i32
    %0 = arith.muli %arg0, %c1_i32 : i32
    %1 = arith.addi %0, %arg1 : i32
    %c0_i32 = arith.constant 0 : i32
    %2 = arith.minsi %1, %c0_i32 : i32
    %c0_i32_0 = arith.constant 0 : i32
    %c0_i32_1 = arith.constant 0 : i32
    return %2, %c0_i32_0 : i32, i32
  }
  func.func @transform_1(%arg0: i32, %arg1: i32) -> (i32, i32) {
    %c1_i32 = arith.constant 1 : i32
    %0 = arith.muli %arg0, %c1_i32 : i32
    %1 = arith.addi %0, %arg1 : i32
    %c0_i32 = arith.constant 0 : i32
    %2 = arith.minsi %1, %c0_i32 : i32
    %c0_i32_0 = arith.constant 0 : i32
    %c0_i32_1 = arith.constant 0 : i32
    return %2, %c0_i32_0 : i32, i32
  }
  func.func @transform_2(%arg0: i32, %arg1: i32) -> (i32, i32, i32) {
    %c0_i32 = arith.constant 0 : i32
    %c0_i32_0 = arith.constant 0 : i32
    %c0_i32_1 = arith.constant 0 : i32
    return %arg0, %c0_i32, %c0_i32_0 : i32, i32, i32
  }
}

</mosaic_0001>

<llo_original>
// kernel: tpu_custom_call.1
$region0: #{tpu_custom_call.1}
  #allocation0 [shape = 'u32[]', space=smem, size = 0x4, offset = 0x4, fixed_abs, tag = 'smem constant byte address 0x4 - core index']
  #allocation1 [shape = 'u32[144,128]{1,0:T(1,128)}', space=vmem, size = 0x12000, scoped, tag = 'internal scratch']
  %s0 = inlined_call_operand.hbm [shape: f32[16,128], index: 0, kind: input, shape index: {}]
  %s1 = inlined_call_operand.hbm [shape: f32[16,128], index: 1, kind: input, shape index: {}]
  %s2 = inlined_call_operand.hbm [shape: f32[1,8,128], index: 2, kind: output, shape index: {}]
  %s3 = sld [smem:[#allocation0]]
  $region30: #{tpu_custom_call.1} parent=0
    _
  %s5 = ssub.s32 1, %s3
  %s6 = scalar_select 0, %s5, %s3
  $region1: #{tpu_custom_call.1} parent=0
    #allocation2 [shape = 'u8[8192]{0}', space=vmem, size = 0x2000, scoped, tag = 'input window, operand 0, single buffered']
    #allocation3 [shape = 's32[1]{0}', space=sflag, size = 0x4, scoped, tag = 'scoped memory for tpu_custom_call.1']
    #allocation4 [shape = 's32[1]{0}', space=sflag, size = 0x4, scoped, tag = 'scoped memory for tpu_custom_call.1']
    #allocation5 [shape = 'u8[8192]{0}', space=vmem, size = 0x2000, scoped, tag = 'input window, operand 1, single buffered']
    #allocation6 [shape = 's32[1]{0}', space=sflag, size = 0x4, scoped, tag = 'scoped memory for tpu_custom_call.1']
    #allocation7 [shape = 'u8[4096]{0}', space=vmem, size = 0x1000, scoped, tag = 'output window, operand 0, single buffered']
    %7 = vsyncpa [#allocation3], 0
    %8 = vsyncpa [#allocation6], 0
    %9 = vsyncpa [#allocation4], 0
    // Predicated region
    $region2: #{tpu_custom_call.1} parent=1 // pred_check
      _
    $region3: #{tpu_custom_call.1} parent=1 // pred_check_branch
      %11 = sbr.rel (0) target = $region5
    $region4: #{tpu_custom_call.1} parent=1 // pred_region
      %s12 = sadd.s32 0, 0
      %p13 = scmp.lt.s32.totalorder %s12, 0
      %s14 = scalar_select %p13, %s12, 0
      %s15 = smul.u32 2, %s14
      %s17 = ssub.s32 256, 256
      %18 = vsyncadd [#allocation3], %s17
      %s19 = smul.addr %s15, 128
      %s20 = scalar_lea.hbm %s0, %s19
      %s21 = sshll.u32 [#allocation2], 4
      %s22 = int_to_ptr.vmem [resolvable:$true] %s21
      %27 = dma.hbm_to_vmem [thread:$0]  %s20, 256, %s22, [#allocation3], 128, 128, 8
    $region5: #{tpu_custom_call.1} parent=1 // pred_fallthru
      _
    // Predicated region
    $region6: #{tpu_custom_call.1} parent=1 // pred_check
      _
    $region7: #{tpu_custom_call.1} parent=1 // pred_check_branch
      %29 = sbr.rel (0) target = $region9
    $region8: #{tpu_custom_call.1} parent=1 // pred_region
      %s30 = sadd.s32 0, 0
      %p31 = scmp.lt.s32.totalorder %s30, 0
      %s32 = scalar_select %p31, %s30, 0
      %s33 = smul.u32 2, %s32
      %s35 = ssub.s32 256, 256
      %36 = vsyncadd [#allocation6], %s35
      %s37 = smul.addr %s33, 128
      %s38 = scalar_lea.hbm %s1, %s37
      %s39 = sshll.u32 [#allocation5], 4
      %s40 = int_to_ptr.vmem [resolvable:$true] %s39
      %45 = dma.hbm_to_vmem [thread:$0]  %s38, 256, %s40, [#allocation6], 128, 128, 8
    $region9: #{tpu_custom_call.1} parent=1 // pred_fallthru
      _
    // Predicated region
    $region10: #{tpu_custom_call.1} parent=1 // pred_check
      _
    $region11: #{tpu_custom_call.1} parent=1 // pred_check_branch
      %47 = sbr.rel (0) target = $region13
    $region12: #{tpu_custom_call.1} parent=1 // pred_region
      %48 = dma.done [#allocation3], 256
    $region13: #{tpu_custom_call.1} parent=1 // pred_fallthru
      _
    // Predicated region
    $region14: #{tpu_custom_call.1} parent=1 // pred_check
      _
    $region15: #{tpu_custom_call.1} parent=1 // pred_check_branch
      %50 = sbr.rel (0) target = $region17
    $region16: #{tpu_custom_call.1} parent=1 // pred_region
      %51 = dma.done [#allocation6], 256
    $region17: #{tpu_custom_call.1} parent=1 // pred_fallthru
      _
    %s52 = sadd.s32 0, 0
    %p53 = scmp.lt.s32.totalorder %s52, 0
    %s54 = scalar_select %p53, %s52, 0
    %s55 = smul.u32 2, %s54
    %s56 = sadd.s32 0, 0
    %p57 = scmp.lt.s32.totalorder %s56, 0
    %s58 = scalar_select %p57, %s56, 0
    %s59 = smul.u32 2, %s58
    %p60 = scmp.eq.s32.totalorder 0, 0
    // Predicated region
    $region18: #{tpu_custom_call.1} parent=1 // pred_check
      %p61 = pneg %p60
    $region19: #{tpu_custom_call.1} parent=1 // pred_check_branch
      %63 = sbr.rel (%p61) target = $region21
    $region20: #{tpu_custom_call.1} parent=1 // pred_region
      %64 = vst [vmem:[#allocation7] sm:$0xff] 0.0
    $region21: #{tpu_custom_call.1} parent=1 // pred_fallthru
      _
    %v65 = vld [vmem:[#allocation2] sm:$0xff]
    %v66 = vld [vmem:[#allocation5] sm:$0xff]
    %v67 = vmax.f32 %v65, 0.0
    %v68 = vmul.f32 %v65, %v66
    %v69 = vsub.f32 %v67, %v68
    %v70 = vand.u32 2147483647, %v65
    %v71 = vsub.f32 0.0, %v70
    %v72 = vmul.f32 %v71, 1.442695
    %v73 = vpow.pop %v72
    %v74 = vadd.f32 %v73, 1.0
    %v75 = vlog2.pop %v74
    %v76 = vmul.f32 %v75, 0.6931472
    %v77 = vmul.f32 -0.5, %v73
    %v78 = vadd.f32 %v77, 1.0
    %v79 = vmul.f32 %v78, %v73
    %v80 = vand.u32 2147483647, %v73
    %vm81 = vcmp.lt.f32.partialorder %v80, 0.0004427343
    %v82 = vsel %vm81, %v79, %v76
    %v83 = vadd.f32 %v69, %v82
    %v84 = vadd.f32 %v83, 0.0
    %s85 = scalar_lea.vmem [#allocation2], 8
    %v86 = vld [vmem:[%s85] sm:$0xff]
    %s87 = scalar_lea.vmem [#allocation5], 8
    %v88 = vld [vmem:[%s87] sm:$0xff]
    %v89 = vmax.f32 %v86, 0.0
    %v90 = vmul.f32 %v86, %v88
    %v91 = vsub.f32 %v89, %v90
    %v92 = vand.u32 2147483647, %v86
    %v93 = vsub.f32 0.0, %v92
    %v94 = vmul.f32 %v93, 1.442695
    %v95 = vpow.pop %v94
    %v96 = vadd.f32 %v95, 1.0
    %v97 = vlog2.pop %v96
    %v98 = vmul.f32 %v97, 0.6931472
    %v99 = vmul.f32 -0.5, %v95
    %v100 = vadd.f32 %v99, 1.0
    %v101 = vmul.f32 %v100, %v95
    %v102 = vand.u32 2147483647, %v95
    %vm103 = vcmp.lt.f32.partialorder %v102, 0.0004427343
    %v104 = vsel %vm103, %v101, %v98
    %v105 = vadd.f32 %v91, %v104
    %v106 = vadd.f32 %v84, %v105
    %v107 = vadd.f32 %v106, 0.0
    %v108 = vld [vmem:[#allocation7] sm:$0xff]
    %v109 = vadd.f32 %v108, %v107
    %110 = vst [vmem:[#allocation7] sm:$0xff] %v109
    // Predicated region
    $region22: #{tpu_custom_call.1} parent=1 // pred_check
      _
    $region23: #{tpu_custom_call.1} parent=1 // pred_check_branch
      %112 = sbr.rel (0) target = $region25
    $region24: #{tpu_custom_call.1} parent=1 // pred_region
      %s114 = ssub.s32 128, 128
      %115 = vsyncadd [#allocation4], %s114
      %s117 = sshll.u32 [#allocation7], 4
      %s118 = int_to_ptr.vmem [resolvable:$true] %s117
      %120 = dma.vmem_to_hbm [thread:$0]  %s118, 128, %s2, [#allocation4]
    $region25: #{tpu_custom_call.1} parent=1 // pred_fallthru
      _
    // Predicated region
    $region26: #{tpu_custom_call.1} parent=1 // pred_check
      _
    $region27: #{tpu_custom_call.1} parent=1 // pred_check_branch
      %122 = sbr.rel (0) target = $region29
    $region28: #{tpu_custom_call.1} parent=1 // pred_region
      %123 = dma.done [#allocation4], 128
    $region29: #{tpu_custom_call.1} parent=1 // pred_fallthru
      _
    %124 = vsyncpa [#allocation3], 1
    %125 = vsyncpa [#allocation6], 1
    %126 = vsyncpa [#allocation4], 1

</llo_original>
